<compile_context>
chip_gen: v6e
topology: v6e:2x2x1
jax: 0.10.0
libtpu: 0.0.40
codegen_flags: <defaults>
</compile_context>

<pallas_src>
import functools

import jax
import jax.numpy as jnp
from jax.experimental import pallas as pl
from jax.experimental.pallas import tpu as pltpu


def _round_up(n, m):
    return (n + m - 1) // m * m


def _cdiv(a, b):
    return (a + b - 1) // b


def _vmem_capacity_bytes():
    """Physical VMEM of the current TPU generation (64 MiB conservative fallback)."""
    try:
        return int(pltpu.get_tpu_info().vmem_capacity_bytes)
    except Exception:
        return 64 << 20          # v7x per-TensorCore capacity; safe everywhere


def _ffn_partial(x_ref, w1_ref, b1_ref, w2_ref):
    """relu(x @ W1_slice + b1_slice) @ W2_slice for one FF slice, f32 result."""
    h = jnp.dot(x_ref[...], w1_ref[...], preferred_element_type=jnp.float32)
    h = jnp.maximum(h + b1_ref[...], 0.0)            # (tm, tf), f32
    # Dropout: identity in eval mode.
    # TODO(synk): training-mode dropout (pltpu.prng_random_bits mask) not emitted.
    return jnp.dot(h.astype(w2_ref.dtype), w2_ref[...],
                   preferred_element_type=jnp.float32)


def _ffn_kernel_acc_in_out(x_ref, w1_ref, b1_ref, w2_ref, b2_ref, o_ref):
    """f32 output block doubles as the accumulator (no scratch buffer)."""
    k = pl.program_id(1)
    contrib = _ffn_partial(x_ref, w1_ref, b1_ref, w2_ref)

    @pl.when(k == 0)
    def _():
        o_ref[...] = contrib

    @pl.when(k > 0)
    def _():
        o_ref[...] += contrib

    @pl.when(k == pl.num_programs(1) - 1)
    def _():
        o_ref[...] += b2_ref[...]


def _ffn_kernel_scratch_acc(x_ref, w1_ref, b1_ref, w2_ref, b2_ref, o_ref,
                            acc_ref):
    """Non-f32 output: accumulate in an f32 scratch, cast once on the last step."""
    k = pl.program_id(1)
    contrib = _ffn_partial(x_ref, w1_ref, b1_ref, w2_ref)

    @pl.when(k == 0)
    def _():
        acc_ref[...] = contrib

    @pl.when(k > 0)
    def _():
        acc_ref[...] += contrib

    @pl.when(k == pl.num_programs(1) - 1)
    def _():
        o_ref[...] = (acc_ref[...] + b2_ref[...]).astype(o_ref.dtype)


def prepare_ffn_params(w1, b1, w2, b2, *, tf=512, compute_dtype=jnp.bfloat16):
    """One-time weight preparation (hoisted out of the per-call path).

    Torch layouts in:  w1 (FF, E), b1 (FF,), w2 (E, FF), b2 (E,).
    Returns ((w1t, b1p, w2t, b2p), tf):
      w1t (Ep, FFp)  -- W1^T, zero-padded, compute_dtype (canonical RHS of x@.)
      b1p (1, FFp)   -- f32
      w2t (FFp, Ep)  -- W2^T, zero-padded, compute_dtype (canonical RHS of h@.)
      b2p (1, Ep)    -- f32
    Zero padding is exact for this op: padded FF units get b1 = 0 -> relu(0)=0
    and hit zero W2 rows; padded E output columns are sliced off by the caller.
    """
    FF, E = w1.shape
    Ep = _round_up(E, 128)
    tf = min(tf, _round_up(FF, 128))
    FFp = _round_up(FF, tf)

    w1t = jnp.asarray(w1).T                      # (E, FF)
    w2t = jnp.asarray(w2).T                      # (FF, E)
    b1p = jnp.asarray(b1, dtype=jnp.float32)
    b2p = jnp.asarray(b2, dtype=jnp.float32)
    if Ep != E or FFp != FF:                     # skip entirely when aligned
        w1t = jnp.pad(w1t, ((0, Ep - E), (0, FFp - FF)))
        w2t = jnp.pad(w2t, ((0, FFp - FF), (0, Ep - E)))
        b1p = jnp.pad(b1p, (0, FFp - FF))
        b2p = jnp.pad(b2p, (0, Ep - E))
    params = (w1t.astype(compute_dtype), b1p.reshape(1, FFp),
              w2t.astype(compute_dtype), b2p.reshape(1, Ep))
    return params, tf


@functools.partial(jax.jit, static_argnames=("tf", "tm"))
def feed_forward_prepared(x, w1t, b1, w2t, b2, *, tf, tm=None):
    """Position-wise FFN on pre-prepared (transposed/padded/cast) weights.

    x: (B, S, E). Output dtype == x.dtype; matmul accumulation is f32.
    """
    B, S, E = x.shape
    Ep, FFp = w1t.shape
    assert Ep % 128 == 0 and FFp % tf == 0
    cdt = w1t.dtype
    out_dtype = x.dtype
    acc_in_out = jnp.dtype(out_dtype) == jnp.dtype(jnp.float32)

    M = B * S
    row_align = 16 if jnp.dtype(cdt).itemsize < 4 else 8
    vmem_cap = _vmem_capacity_bytes()

    if tm is None:
        # 128-MiB VMEM parts (v5e/v6e): big row tiles to reach the weight-
        # streaming roofline; 64-MiB parts (v7x): cap at 512.
        tm = 1024 if vmem_cap >= (100 << 20) else 512
        if M >= 2 * row_align:          # keep >= 2 row tiles for 2-TC sharding
            tm = min(tm, _round_up(_cdiv(M, 2), row_align))
    tm = _round_up(min(tm, M), row_align)
    Mp = _round_up(M, tm)

    x2d = x.reshape(M, E).astype(cdt)
    if Mp != M or Ep != E:
        x2d = jnp.pad(x2d, ((0, Mp - M), (0, Ep - E)))

    grid = (Mp // tm, FFp // tf)
    n_row_tiles = grid[0]

    in_bytes = jnp.dtype(cdt).itemsize
    out_bytes = jnp.dtype(out_dtype).itemsize

    # Double-buffered tiles (+ f32 scratch acc only when output isn't f32).
    bufs = (tm * Ep * in_bytes + Ep * tf * in_bytes + tf * Ep * in_bytes
            + 8 * tf * 4 + 8 * Ep * 4 + tm * Ep * out_bytes)
    vmem_est = 2 * bufs + (0 if acc_in_out else tm * Ep * 4)
    vmem_limit = int(min(max(int(vmem_est * 1.4) + (2 << 20), 16 << 20),
                         int(vmem_cap * 0.85)))

    cost = pl.CostEstimate(
        flops=4 * Mp * Ep * FFp,                        # two matmuls
        transcendentals=0,
        bytes_accessed=(Mp * Ep * in_bytes                       # x read
                        + n_row_tiles * 2 * Ep * FFp * in_bytes  # W1+W2 re-streamed
                        + n_row_tiles * (FFp + Ep) * 4           # biases re-streamed
                        + Mp * Ep * out_bytes))                  # output write

    in_specs = [
        pl.BlockSpec((tm, Ep), lambda i, k: (i, 0)),    # x row tile (resident over k)
        pl.BlockSpec((Ep, tf), lambda i, k: (0, k)),    # W1^T FF-column slice
        pl.BlockSpec((1, tf), lambda i, k: (0, k)),     # b1 slice
        pl.BlockSpec((tf, Ep), lambda i, k: (k, 0)),    # W2^T FF-row slice
        pl.BlockSpec((1, Ep), lambda i, k: (0, 0)),     # b2 (grid-invariant)
    ]
    out_spec = pl.BlockSpec((tm, Ep), lambda i, k: (i, 0))

    if acc_in_out:
        kernel, scratch = _ffn_kernel_acc_in_out, []
    else:
        kernel, scratch = (_ffn_kernel_scratch_acc,
                           [pltpu.VMEM((tm, Ep), jnp.float32)])

    out = pl.pallas_call(
        kernel,
        out_shape=jax.ShapeDtypeStruct((Mp, Ep), out_dtype),
        grid_spec=pltpu.PrefetchScalarGridSpec(
            num_scalar_prefetch=0,
            grid=grid,
            in_specs=in_specs,
            out_specs=out_spec,
            scratch_shapes=scratch,
        ),
        compiler_params=pltpu.CompilerParams(
            dimension_semantics=("parallel", "arbitrary"),
            vmem_limit_bytes=vmem_limit),
        cost_estimate=cost,
    )(x2d, w1t, b1, w2t, b2)

    return out[:M, :E].reshape(B, S, E)


def feed_forward(x, w1, b1, w2, b2, *, tm=None, tf=512,
                 compute_dtype=jnp.bfloat16):
    """Convenience wrapper: prep + call. For repeated calls with the same
    weights, call prepare_ffn_params() once and use feed_forward_prepared."""
    params, tf = prepare_ffn_params(w1, b1, w2, b2, tf=tf,
                                    compute_dtype=compute_dtype)
    return feed_forward_prepared(x, *params, tf=tf, tm=tm)


def _init_linear(key, out_features, in_features, dtype=jnp.float32):
    """Deterministic init mimicking torch.nn.Linear: U(-k, k), k = 1/sqrt(in)."""
    kw, kb = jax.random.split(key)
    bound = 1.0 / (in_features ** 0.5)
    w = jax.random.uniform(kw, (out_features, in_features), dtype,
                           minval=-bound, maxval=bound)
    b = jax.random.uniform(kb, (out_features,), dtype,
                           minval=-bound, maxval=bound)
    return w, b


if __name__ == "__main__":
    # Small demo shapes; deliberately NOT multiples of 128 to exercise padding,
    # with tiles small enough to run multi-step FF reductions + multiple row tiles.
    batch, seq, embed_dim, ff_dim = 2, 20, 96, 192

    root = jax.random.PRNGKey(0)
    kx, k1, k2 = jax.random.split(root, 3)

    x = jax.random.normal(kx, (batch, seq, embed_dim), jnp.float32)
    w1, b1 = _init_linear(k1, ff_dim, embed_dim)   # linear1: embed -> ff
    w2, b2 = _init_linear(k2, embed_dim, ff_dim)   # linear2: ff -> embed

    # Pure-JAX reference (dropout = identity in eval mode).
    ref = jnp.maximum(x @ w1.T + b1, 0.0) @ w2.T + b2

    # 1. Exact f32 path (convenience wrapper): small explicit tiles exercise
    #    M/E/FF padding, 3 row tiles x 2 FF reduction steps, acc-in-output kernel.
    y = feed_forward(x, w1, b1, w2, b2, tm=16, tf=128,
                     compute_dtype=jnp.float32)
    y = jax.block_until_ready(y)
    assert y.shape == (batch, seq, embed_dim)
    assert jnp.allclose(y, ref, atol=1e-4, rtol=1e-4)

    # 2. bf16 compute (MXU-native fast path), f32 in/out, auto per-generation
    #    tiling. Weights are prepared ONCE and reused across calls.
    params_bf16, tf_bf16 = prepare_ffn_params(w1, b1, w2, b2, tf=128,
                                              compute_dtype=jnp.bfloat16)
    y_bf16 = jax.block_until_ready(
        feed_forward_prepared(x, *params_bf16, tf=tf_bf16))
    assert y_bf16.shape == (batch, seq, embed_dim)
    assert jnp.allclose(y_bf16, ref, atol=5e-2, rtol=5e-2)

    # ... second call reusing the same prepared weights (no re-prep per call).
    ref_b = jnp.maximum((x + 1.0) @ w1.T + b1, 0.0) @ w2.T + b2
    y_bf16_b = jax.block_until_ready(
        feed_forward_prepared(x + 1.0, *params_bf16, tf=tf_bf16))
    assert jnp.allclose(y_bf16_b, ref_b, atol=5e-2, rtol=5e-2)

    # 3. bf16 activations in / bf16 out: exercises the scratch-accumulator
    #    kernel variant (non-f32 output dtype).
    y_b = jax.block_until_ready(
        feed_forward_prepared(x.astype(jnp.bfloat16), *params_bf16,
                              tf=tf_bf16, tm=32))
    assert y_b.dtype == jnp.bfloat16
    assert jnp.allclose(y_b.astype(jnp.float32), ref, atol=1e-1, rtol=1e-1)

    print("KERNEL_OK")
</pallas_src>

<mosaic_0001>
module attributes {stable_mosaic.version = 11 : i64} {
  func.func @_ffn_kernel_acc_in_out(%arg0: i32, %arg1: i32, %arg2: memref<16x128xf32, #tpu.memory_space<vmem>>, %arg3: memref<128x128xf32, #tpu.memory_space<vmem>>, %arg4: memref<1x128xf32, #tpu.memory_space<vmem>>, %arg5: memref<128x128xf32, #tpu.memory_space<vmem>>, %arg6: memref<1x128xf32, #tpu.memory_space<vmem>>, %arg7: memref<16x128xf32, #tpu.memory_space<vmem>>) attributes {dimension_semantics = [#tpu.dimension_semantics<parallel>, #tpu.dimension_semantics<arbitrary>], iteration_bounds = array<i64: 3, 2>, scalar_prefetch = 0 : i64, scratch_operands = 0 : i64, tpu.core_type = #tpu.core_type<tc>, window_params = [{transform_indices = @transform_0, window_bounds = array<i64: 16, 128>}, {transform_indices = @transform_1, window_bounds = array<i64: 128, 128>}, {transform_indices = @transform_2, window_bounds = array<i64: 1, 128>}, {transform_indices = @transform_3, window_bounds = array<i64: 128, 128>}, {pipeline_mode = #tpu.pipeline_mode<synchronous>, transform_indices = @transform_4, window_bounds = array<i64: 1, 128>}, {transform_indices = @transform_5, window_bounds = array<i64: 16, 128>}]} {
    %c0 = arith.constant 0 : index
    %c0_0 = arith.constant 0 : index
    %0 = vector.load %arg2[%c0, %c0_0] : memref<16x128xf32, #tpu.memory_space<vmem>>, vector<16x128xf32>
    %c0_1 = arith.constant 0 : index
    %c0_2 = arith.constant 0 : index
    %1 = vector.load %arg3[%c0_1, %c0_2] : memref<128x128xf32, #tpu.memory_space<vmem>>, vector<128x128xf32>
    %cst = arith.constant dense<0.000000e+00> : vector<16x128xf32>
    %2 = tpu.matmul %0, %1, %cst {dimension_numbers = #tpu.dot_dimension_numbers<[1], [0], [0], [1], [0, 0, 1, 1], [], []>} : vector<16x128xf32>, vector<128x128xf32>, vector<16x128xf32> -> vector<16x128xf32>
    %c0_3 = arith.constant 0 : index
    %c0_4 = arith.constant 0 : index
    %3 = vector.load %arg4[%c0_3, %c0_4] : memref<1x128xf32, #tpu.memory_space<vmem>>, vector<1x128xf32>
    %4 = vector.broadcast %3 : vector<1x128xf32> to vector<16x128xf32>
    %5 = arith.addf %2, %4 : vector<16x128xf32>
    %cst_5 = arith.constant 0.000000e+00 : f32
    %6 = vector.broadcast %cst_5 : f32 to vector<16x128xf32>
    %7 = arith.maximumf %5, %6 : vector<16x128xf32>
    %c0_6 = arith.constant 0 : index
    %c0_7 = arith.constant 0 : index
    %8 = vector.load %arg5[%c0_6, %c0_7] : memref<128x128xf32, #tpu.memory_space<vmem>>, vector<128x128xf32>
    %cst_8 = arith.constant dense<0.000000e+00> : vector<16x128xf32>
    %9 = tpu.matmul %7, %8, %cst_8 {dimension_numbers = #tpu.dot_dimension_numbers<[1], [0], [0], [1], [0, 0, 1, 1], [], []>} : vector<16x128xf32>, vector<128x128xf32>, vector<16x128xf32> -> vector<16x128xf32>
    %c0_i32 = arith.constant 0 : i32
    %10 = arith.cmpi eq, %arg1, %c0_i32 : i32
    %11 = arith.extui %10 : i1 to i32
    %c0_i32_9 = arith.constant 0 : i32
    %12 = arith.cmpi ne, %11, %c0_i32_9 : i32
    scf.if %12 {
      %c0_13 = arith.constant 0 : index
      %c0_14 = arith.constant 0 : index
      %19 = vector.load %arg7[%c0_13, %c0_14] : memref<16x128xf32, #tpu.memory_space<vmem>>, vector<16x128xf32>
      tpu.vector_store %arg7[%c0_13, %c0_14], %9 {strides = array<i32>} : memref<16x128xf32, #tpu.memory_space<vmem>>, vector<16x128xf32>,
    } else {
    }
    %c0_i32_10 = arith.constant 0 : i32
    %13 = arith.cmpi sgt, %arg1, %c0_i32_10 : i32
    %14 = arith.extui %13 : i1 to i32
    %c0_i32_11 = arith.constant 0 : i32
    %15 = arith.cmpi ne, %14, %c0_i32_11 : i32
    scf.if %15 {
      %c0_13 = arith.constant 0 : index
      %c0_14 = arith.constant 0 : index
      %19 = vector.load %arg7[%c0_13, %c0_14] : memref<16x128xf32, #tpu.memory_space<vmem>>, vector<16x128xf32>
      %20 = arith.addf %19, %9 : vector<16x128xf32>
      %c0_15 = arith.constant 0 : index
      %c0_16 = arith.constant 0 : index
      %21 = vector.load %arg7[%c0_15, %c0_16] : memref<16x128xf32, #tpu.memory_space<vmem>>, vector<16x128xf32>
      tpu.vector_store %arg7[%c0_15, %c0_16], %20 {strides = array<i32>} : memref<16x128xf32, #tpu.memory_space<vmem>>, vector<16x128xf32>,
    } else {
    }
    %c1_i32 = arith.constant 1 : i32
    %16 = arith.cmpi eq, %arg1, %c1_i32 : i32
    %17 = arith.extui %16 : i1 to i32
    %c0_i32_12 = arith.constant 0 : i32
    %18 = arith.cmpi ne, %17, %c0_i32_12 : i32
    scf.if %18 {
      %c0_13 = arith.constant 0 : index
      %c0_14 = arith.constant 0 : index
      %19 = vector.load %arg7[%c0_13, %c0_14] : memref<16x128xf32, #tpu.memory_space<vmem>>, vector<16x128xf32>
      %c0_15 = arith.constant 0 : index
      %c0_16 = arith.constant 0 : index
      %20 = vector.load %arg6[%c0_15, %c0_16] : memref<1x128xf32, #tpu.memory_space<vmem>>, vector<1x128xf32>
      %21 = vector.broadcast %20 : vector<1x128xf32> to vector<16x128xf32>
      %22 = arith.addf %19, %21 : vector<16x128xf32>
      %c0_17 = arith.constant 0 : index
      %c0_18 = arith.constant 0 : index
      %23 = vector.load %arg7[%c0_17, %c0_18] : memref<16x128xf32, #tpu.memory_space<vmem>>, vector<16x128xf32>
      tpu.vector_store %arg7[%c0_17, %c0_18], %22 {strides = array<i32>} : memref<16x128xf32, #tpu.memory_space<vmem>>, vector<16x128xf32>,
    } else {
    }
    return
  }
  func.func @transform_0(%arg0: i32, %arg1: i32) -> (i32, i32) {
    %c0_i32 = arith.constant 0 : i32
    %c0_i32_0 = arith.constant 0 : i32
    return %arg0, %c0_i32 : i32, i32
  }
  func.func @transform_1(%arg0: i32, %arg1: i32) -> (i32, i32) {
    %c0_i32 = arith.constant 0 : i32
    %c0_i32_0 = arith.constant 0 : i32
    return %c0_i32, %arg1 : i32, i32
  }
  func.func @transform_2(%arg0: i32, %arg1: i32) -> (i32, i32) {
    %c0_i32 = arith.constant 0 : i32
    %c0_i32_0 = arith.constant 0 : i32
    return %c0_i32, %arg1 : i32, i32
  }
  func.func @transform_3(%arg0: i32, %arg1: i32) -> (i32, i32) {
    %c0_i32 = arith.constant 0 : i32
    %c0_i32_0 = arith.constant 0 : i32
    return %arg1, %c0_i32 : i32, i32
  }
  func.func @transform_4(%arg0: i32, %arg1: i32) -> (i32, i32) {
    %c0_i32 = arith.constant 0 : i32
    %c0_i32_0 = arith.constant 0 : i32
    %c0_i32_1 = arith.constant 0 : i32
    return %c0_i32, %c0_i32_0 : i32, i32
  }
  func.func @transform_5(%arg0: i32, %arg1: i32) -> (i32, i32) {
    %c0_i32 = arith.constant 0 : i32
    %c0_i32_0 = arith.constant 0 : i32
    return %arg0, %c0_i32 : i32, i32
  }
}

</mosaic_0001>

<llo_original>
// kernel: feed_forward_prepared.1
$region0: #{feed_forward_prepared.1}
  #allocation0 [shape = 'u32[]', space=smem, size = 0x4, offset = 0x4, fixed_abs, tag = 'smem constant byte address 0x4 - core index']
  #allocation1 [shape = 'u32[144,128]{1,0:T(1,128)}', space=vmem, size = 0x12000, scoped, tag = 'internal scratch']
  %s0 = inlined_call_operand.vmem [shape: f32[48,128], index: 0, kind: input, shape index: {}]
  %s1 = inlined_call_operand.vmem [shape: f32[128,256], index: 1, kind: input, shape index: {}]
  %s2 = inlined_call_operand.vmem [shape: f32[1,256], index: 2, kind: input, shape index: {}]
  %s3 = inlined_call_operand.hbm [shape: f32[256,128], index: 3, kind: input, shape index: {}]
  %s4 = inlined_call_operand.vmem [shape: f32[1,128], index: 4, kind: input, shape index: {}]
  %s5 = inlined_call_operand.vmem [shape: f32[48,128], index: 5, kind: output, shape index: {}]
  %s6 = sld [smem:[#allocation0]]
  $region107: #{feed_forward_prepared.1} parent=0
    _
  %s8 = ssub.s32 1, %s6
  %s9 = scalar_select 0, %s8, %s6
  $region1: #{feed_forward_prepared.1} parent=0
    #allocation2 [shape = 'u8[131072]{0}', space=vmem, size = 0x20000, scoped, tag = 'input window, operand 1']
    #allocation3 [shape = 'u8[131072]{0}', space=vmem, size = 0x20000, scoped, tag = 'input window, operand 3']
    #allocation4 [shape = 's32[2]{0}', space=sflag, size = 0x8, scoped, tag = 'scoped memory for feed_forward_prepared.1']
    %10 = vsyncpa [#allocation4], 0
    %s11 = scalar_lea.sflag [#allocation4], 1
    %12 = vsyncpa %s11, 0
    loop: start=0, step=1, limit=8
    $region2: #{feed_forward_prepared.1} parent=1 // loop_pre_header
      _
    $region3: #{feed_forward_prepared.1} parent=1 // loop_header
      %s14 = sphi 0, %s18
      %p15 = scmp.ge.s32.totalorder %s14, 8
      %s21 = sphi 0, %s33
      %s22 = sphi 0, %s29
      %s23 = sphi 0, %s21
      %s24 = sphi 0, %s22
      %s25 = sphi 0, %s23
      %s26 = sphi 0, %s24
      %s36 = sphi 0, %s38
      %s39 = sphi 0, %s36
      %s40 = sphi 0, %s39
      %s56 = sphi 0, %s40
      %s62 = sphi 0, %s64
      %s65 = sphi 0, %s62
      %s66 = sphi 0, %s65
      %s82 = sphi 0, %s66
      %s88 = sphi 0, %s90
      %s91 = sphi 0, %s88
      %s92 = sphi 0, %s91
      %s108 = sphi 0, %s92
      %s114 = sphi 0, %s116
      %s117 = sphi 0, %s114
      %s118 = sphi 0, %s117
      %s134 = sphi 0, %s118
      %s138 = sphi 0, %s138
      %s140 = sphi 0, %s138
      %s141 = sphi 0, %s140
      %s155 = sphi 0, %s141
      %s161 = sphi 0, %s163
      %s164 = sphi 0, %s161
      %s165 = sphi 0, %s164
      %s181 = sphi 0, %s165
    $region4: #{feed_forward_prepared.1} parent=1 // loop_header_branch
      %17 = sbr.rel (%p15) target = $region8
    $region5: #{feed_forward_prepared.1} parent=1 // loop_body
      %s19 = ssub.s32 %s14, 1
      %s20 = ssub.s32 %s14, 2
      %s27 = sadd.s32 1, %s22
      %p28 = scmp.ge.s32.totalorder %s27, 2
      %s29 = scalar_select %p28, 0, %s27
      %s30 = sadd.s32 1, %s21
      %s31 = scalar_select %p28, %s30, %s21
      %p32 = scmp.ge.s32.totalorder %s31, 3
      %s33 = scalar_select %p32, 0, %s31
      %s34 = ssub.s32 %s21, %s33
      %p35 = scmp.eq.s32.totalorder %s34, 0
      %s37 = sadd.s32 %s36, 1
      %s38 = scalar_select %p35, %s36, %s37
      %p41 = pneg %p35
      %p42 = scmp.eq.s32.totalorder %s14, 5
      %p43 = por %p41, %p42
      %p44 = scmp.ne.s32.totalorder %s36, %s39
      %p45 = scmp.eq.s32.totalorder %s14, 0
      %p46 = por %p44, %p45
      %p47 = scmp.ne.s32.totalorder %s36, %s39
      %p48 = scmp.eq.s32.totalorder %s19, 5
      %p49 = por %p47, %p48
      %p50 = scmp.ne.s32.totalorder %s39, %s40
      %p51 = scmp.eq.s32.totalorder %s19, 0
      %p52 = por %p50, %p51
      %p53 = scmp.ne.s32.totalorder %s39, %s40
      %p54 = scmp.eq.s32.totalorder %s20, 5
      %p55 = por %p53, %p54
      %p57 = scmp.ne.s32.totalorder %s40, %s56
      %p58 = scmp.eq.s32.totalorder %s20, 0
      %p59 = por %p57, %p58
      %s60 = ssub.s32 %s22, %s29
      %p61 = scmp.eq.s32.totalorder %s60, 0
      %s63 = sadd.s32 %s62, 1
      %s64 = scalar_select %p61, %s62, %s63
      %p67 = pneg %p61
      %p68 = scmp.eq.s32.totalorder %s14, 5
      %p69 = por %p67, %p68
      %p70 = scmp.ne.s32.totalorder %s62, %s65
      %p71 = scmp.eq.s32.totalorder %s14, 0
      %p72 = por %p70, %p71
      %p73 = scmp.ne.s32.totalorder %s62, %s65
      %p74 = scmp.eq.s32.totalorder %s19, 5
      %p75 = por %p73, %p74
      %p76 = scmp.ne.s32.totalorder %s65, %s66
      %p77 = scmp.eq.s32.totalorder %s19, 0
      %p78 = por %p76, %p77
      %p79 = scmp.ne.s32.totalorder %s65, %s66
      %p80 = scmp.eq.s32.totalorder %s20, 5
      %p81 = por %p79, %p80
      %p83 = scmp.ne.s32.totalorder %s66, %s82
      %p84 = scmp.eq.s32.totalorder %s20, 0
      %p85 = por %p83, %p84
      %s86 = ssub.s32 %s22, %s29
      %p87 = scmp.eq.s32.totalorder %s86, 0
      %s89 = sadd.s32 %s88, 1
      %s90 = scalar_select %p87, %s88, %s89
      %p93 = pneg %p87
      %p94 = scmp.eq.s32.totalorder %s14, 5
      %p95 = por %p93, %p94
      %p96 = scmp.ne.s32.totalorder %s88, %s91
      %p97 = scmp.eq.s32.totalorder %s14, 0
      %p98 = por %p96, %p97
      %p99 = scmp.ne.s32.totalorder %s88, %s91
      %p100 = scmp.eq.s32.totalorder %s19, 5
      %p101 = por %p99, %p100
      %p102 = scmp.ne.s32.totalorder %s91, %s92
      %p103 = scmp.eq.s32.totalorder %s19, 0
      %p104 = por %p102, %p103
      %p105 = scmp.ne.s32.totalorder %s91, %s92
      %p106 = scmp.eq.s32.totalorder %s20, 5
      %p107 = por %p105, %p106
      %p109 = scmp.ne.s32.totalorder %s92, %s108
      %p110 = scmp.eq.s32.totalorder %s20, 0
      %p111 = por %p109, %p110
      %s112 = ssub.s32 %s22, %s29
      %p113 = scmp.eq.s32.totalorder %s112, 0
      %s115 = sadd.s32 %s114, 1
      %s116 = scalar_select %p113, %s114, %s115
      %p119 = pneg %p113
      %p120 = scmp.eq.s32.totalorder %s14, 5
      %p121 = por %p119, %p120
      %p122 = scmp.ne.s32.totalorder %s114, %s117
      %p123 = scmp.eq.s32.totalorder %s14, 0
      %p124 = por %p122, %p123
      %p125 = scmp.ne.s32.totalorder %s114, %s117
      %p126 = scmp.eq.s32.totalorder %s19, 5
      %p127 = por %p125, %p126
      %p128 = scmp.ne.s32.totalorder %s117, %s118
      %p129 = scmp.eq.s32.totalorder %s19, 0
      %p130 = por %p128, %p129
      %p131 = scmp.ne.s32.totalorder %s117, %s118
      %p132 = scmp.eq.s32.totalorder %s20, 5
      %p133 = por %p131, %p132
      %p135 = scmp.ne.s32.totalorder %s118, %s134
      %p136 = scmp.eq.s32.totalorder %s20, 0
      %p137 = por %p135, %p136
      %s139 = sadd.s32 %s138, 1
      %p142 = scmp.eq.s32.totalorder %s14, 5
      %p143 = scmp.ne.s32.totalorder %s138, %s140
      %p144 = scmp.eq.s32.totalorder %s14, 0
      %p145 = por %p143, %p144
      %p146 = scmp.ne.s32.totalorder %s138, %s140
      %p147 = scmp.eq.s32.totalorder %s19, 5
      %p148 = por %p146, %p147
      %p149 = scmp.ne.s32.totalorder %s140, %s141
      %p150 = scmp.eq.s32.totalorder %s19, 0
      %p151 = por %p149, %p150
      %p152 = scmp.ne.s32.totalorder %s140, %s141
      %p153 = scmp.eq.s32.totalorder %s20, 5
      %p154 = por %p152, %p153
      %p156 = scmp.ne.s32.totalorder %s141, %s155
      %p157 = scmp.eq.s32.totalorder %s20, 0
      %p158 = por %p156, %p157
      %s159 = ssub.s32 %s21, %s33
      %p160 = scmp.eq.s32.totalorder %s159, 0
      %s162 = sadd.s32 %s161, 1
      %s163 = scalar_select %p160, %s161, %s162
      %p166 = pneg %p160
      %p167 = scmp.eq.s32.totalorder %s14, 5
      %p168 = por %p166, %p167
      %p169 = scmp.ne.s32.totalorder %s161, %s164
      %p170 = scmp.eq.s32.totalorder %s14, 0
      %p171 = por %p169, %p170
      %p172 = scmp.ne.s32.totalorder %s161, %s164
      %p173 = scmp.eq.s32.totalorder %s19, 5
      %p174 = por %p172, %p173
      %p175 = scmp.ne.s32.totalorder %s164, %s165
      %p176 = scmp.eq.s32.totalorder %s19, 0
      %p177 = por %p175, %p176
      %p178 = scmp.ne.s32.totalorder %s164, %s165
      %p179 = scmp.eq.s32.totalorder %s20, 5
      %p180 = por %p178, %p179
      %p182 = scmp.ne.s32.totalorder %s165, %s181
      %p183 = scmp.eq.s32.totalorder %s20, 0
      %p184 = por %p182, %p183
      %p185 = scmp.le.s32.totalorder 1, %s14
      %p186 = scmp.lt.s32.totalorder %s14, 7
      %p187 = pnand %p185, %p186
      %p188 = pneg %p187
      // Predicated region
      $region9: #{feed_forward_prepared.1} parent=5 // pred_check
        _
      $region10: #{feed_forward_prepared.1} parent=5 // pred_check_branch
        %190 = sbr.rel (%p187) target = $region12
      $region11: #{feed_forward_prepared.1} parent=5 // pred_region
        %s191 = ssub.s32 %s14, 1
        // Predicated region
        $region13: #{feed_forward_prepared.1} parent=11 // pred_check
          %p192 = pneg %p151
        $region14: #{feed_forward_prepared.1} parent=11 // pred_check_branch
          %194 = sbr.rel (%p192) target = $region16
        $region15: #{feed_forward_prepared.1} parent=11 // pred_region
          _
        $region16: #{feed_forward_prepared.1} parent=11 // pred_fallthru
          _
      $region12: #{feed_forward_prepared.1} parent=5 // pred_fallthru
        _
      %p195 = scmp.lt.s32.totalorder %s14, 6
      // Predicated region
      $region17: #{feed_forward_prepared.1} parent=5 // pred_check
        %p196 = pneg %p195
      $region18: #{feed_forward_prepared.1} parent=5 // pred_check_branch
        %198 = sbr.rel (%p196) target = $region20
      $region19: #{feed_forward_prepared.1} parent=5 // pred_region
        // Predicated region
        $region21: #{feed_forward_prepared.1} parent=19 // pred_check
          %p199 = pneg %p46
        $region22: #{feed_forward_prepared.1} parent=19 // pred_check_branch
          %201 = sbr.rel (%p199) target = $region24
        $region23: #{feed_forward_prepared.1} parent=19 // pred_region
          %s202 = smul.u32 2, %s21
          %p203 = scmp.lt.s32.totalorder %s202, 5
          %s204 = scalar_select %p203, %s202, 5
          %s205 = smul.addr %s204, 8
          %s206 = scalar_lea.vmem %s0, %s205
          %s207 = smul.u32 2, %s21
        $region24: #{feed_forward_prepared.1} parent=19 // pred_fallthru
          _
        // Predicated region
        $region25: #{feed_forward_prepared.1} parent=19 // pred_check
          %p208 = pneg %p72
        $region26: #{feed_forward_prepared.1} parent=19 // pred_check_branch
          %210 = sbr.rel (%p208) target = $region28
        $region27: #{feed_forward_prepared.1} parent=19 // pred_region
          %s211 = sand.u32 %s62, 1
          %s212 = sand.u32 %s62, 1
          %s213 = smul.addr %s212, 128
          %s214 = scalar_lea.vmem [#allocation2], %s213
          %s215 = smul.addr %s22, 8
          %s216 = scalar_lea.vmem %s1, %s215
          // Predicated region
          $region29: #{feed_forward_prepared.1} parent=27 // pred_check
            _
          $region30: #{feed_forward_prepared.1} parent=27 // pred_check_branch
            %218 = sbr.rel (0) target = $region32
          $region31: #{feed_forward_prepared.1} parent=27 // pred_region
            // Predicated region
            $region33: #{feed_forward_prepared.1} parent=31 // pred_check
              _
            $region34: #{feed_forward_prepared.1} parent=31 // pred_check_branch
              %220 = sbr.rel (0) target = $region36
            $region35: #{feed_forward_prepared.1} parent=31 // pred_region
              // Predicated region
              $region48: #{feed_forward_prepared.1} parent=35 // pred_check
                _
              $region49: #{feed_forward_prepared.1} parent=35 // pred_check_branch
                %266 = sbr.rel (0) target = $region51
              $region50: #{feed_forward_prepared.1} parent=35 // pred_region
                loop: start=0, step=1, limit=1
                $region52: #{feed_forward_prepared.1} parent=50 // loop_pre_header
                  _
                $region53: #{feed_forward_prepared.1} parent=50 // loop_header
                  %s268 = sphi 0, %s272
                  %p269 = scmp.ge.s32.totalorder %s268, 1
                  %s273 = sphi %s216, %s216
                  %s274 = sphi %s214, %s214
                $region54: #{feed_forward_prepared.1} parent=50 // loop_header_branch
                  %271 = sbr.rel (%p269) target = $region58
                $region55: #{feed_forward_prepared.1} parent=50 // loop_body
                  %v275 = vld [vmem:[%s273] sm:$0xff]
                  %276 = vst [vmem:[%s274] sm:$0xff] %v275
                  %v277 = vld [vmem:[%s273 + $0x10] sm:$0xff]
                  %278 = vst [vmem:[%s274 + $0x8] sm:$0xff] %v277
                  %v279 = vld [vmem:[%s273 + $0x20] sm:$0xff]
                  %280 = vst [vmem:[%s274 + $0x10] sm:$0xff] %v279
                  %v281 = vld [vmem:[%s273 + $0x30] sm:$0xff]
                  %282 = vst [vmem:[%s274 + $0x18] sm:$0xff] %v281
                  %v283 = vld [vmem:[%s273 + $0x40] sm:$0xff]
                  %284 = vst [vmem:[%s274 + $0x20] sm:$0xff] %v283
                  %v285 = vld [vmem:[%s273 + $0x50] sm:$0xff]
                  %286 = vst [vmem:[%s274 + $0x28] sm:$0xff] %v285
                  %v287 = vld [vmem:[%s273 + $0x60] sm:$0xff]
                  %288 = vst [vmem:[%s274 + $0x30] sm:$0xff] %v287
                  %v289 = vld [vmem:[%s273 + $0x70] sm:$0xff]
                  %290 = vst [vmem:[%s274 + $0x38] sm:$0xff] %v289
                  %v291 = vld [vmem:[%s273 + $0x80] sm:$0xff]
                  %292 = vst [vmem:[%s274 + $0x40] sm:$0xff] %v291
                  %v293 = vld [vmem:[%s273 + $0x90] sm:$0xff]
                  %294 = vst [vmem:[%s274 + $0x48] sm:$0xff] %v293
                  %v295 = vld [vmem:[%s273 + $0xa0] sm:$0xff]
                  %296 = vst [vmem:[%s274 + $0x50] sm:$0xff] %v295
                  %v297 = vld [vmem:[%s273 + $0xb0] sm:$0xff]
                  %298 = vst [vmem:[%s274 + $0x58] sm:$0xff] %v297
                  %v299 = vld [vmem:[%s273 + $0xc0] sm:$0xff]
                  %300 = vst [vmem:[%s274 + $0x60] sm:$0xff] %v299
                  %v301 = vld [vmem:[%s273 + $0xd0] sm:$0xff]
                  %302 = vst [vmem:[%s274 + $0x68] sm:$0xff] %v301
                  %v303 = vld [vmem:[%s273 + $0xe0] sm:$0xff]
                  %304 = vst [vmem:[%s274 + $0x70] sm:$0xff] %v303
                  %v305 = vld [vmem:[%s273 + $0xf0] sm:$0xff]
                  %306 = vst [vmem:[%s274 + $0x78] sm:$0xff] %v305
                $region56: #{feed_forward_prepared.1} parent=50 // loop_footer
                  %s272 = sadd.s32 1, %s268
                $region57: #{feed_forward_prepared.1} parent=50 // loop_footer_branch
                  %267 = sbr.rel target = $region53
                $region58: #{feed_forward_prepared.1} parent=50 // loop_exit
                  _
              $region51: #{feed_forward_prepared.1} parent=35 // pred_fallthru
                _
              // Predicated region
              $region59: #{feed_forward_prepared.1} parent=35 // pred_check
                _
              $region60: #{feed_forward_prepared.1} parent=35 // pred_check_branch
                %308 = sbr.rel target = $region62
              $region61: #{feed_forward_prepared.1} parent=35 // pred_region
                _
              $region62: #{feed_forward_prepared.1} parent=35 // pred_fallthru
                _
            $region36: #{feed_forward_prepared.1} parent=31 // pred_fallthru
              _
            // Predicated region
            $region37: #{feed_forward_prepared.1} parent=31 // pred_check
              _
            $region38: #{feed_forward_prepared.1} parent=31 // pred_check_branch
              %222 = sbr.rel target = $region40
            $region39: #{feed_forward_prepared.1} parent=31 // pred_region
              %s224 = ssub.s32 256, 1
              loop: start=0, step=1, limit=1
              $region41: #{feed_forward_prepared.1} parent=39 // loop_pre_header
                _
              $region42: #{feed_forward_prepared.1} parent=39 // loop_header
                %s226 = sphi 0, %s230
                %p227 = scmp.ge.s32.totalorder %s226, 1
                %s231 = sphi %s216, %s216
                %s232 = sphi %s214, %s214
              $region43: #{feed_forward_prepared.1} parent=39 // loop_header_branch
                %229 = sbr.rel (%p227) target = $region47
              $region44: #{feed_forward_prepared.1} parent=39 // loop_body
                %v233 = vld [vmem:[%s231] sm:%s224]
                %234 = vst [vmem:[%s232] sm:%s224] %v233
                %v235 = vld [vmem:[%s231 + $0x10] sm:%s224]
                %236 = vst [vmem:[%s232 + $0x8] sm:%s224] %v235
                %v237 = vld [vmem:[%s231 + $0x20] sm:%s224]
                %238 = vst [vmem:[%s232 + $0x10] sm:%s224] %v237
                %v239 = vld [vmem:[%s231 + $0x30] sm:%s224]
                %240 = vst [vmem:[%s232 + $0x18] sm:%s224] %v239
                %v241 = vld [vmem:[%s231 + $0x40] sm:%s224]
                %242 = vst [vmem:[%s232 + $0x20] sm:%s224] %v241
                %v243 = vld [vmem:[%s231 + $0x50] sm:%s224]
                %244 = vst [vmem:[%s232 + $0x28] sm:%s224] %v243
                %v245 = vld [vmem:[%s231 + $0x60] sm:%s224]
                %246 = vst [vmem:[%s232 + $0x30] sm:%s224] %v245
                %v247 = vld [vmem:[%s231 + $0x70] sm:%s224]
                %248 = vst [vmem:[%s232 + $0x38] sm:%s224] %v247
                %v249 = vld [vmem:[%s231 + $0x80] sm:%s224]
                %250 = vst [vmem:[%s232 + $0x40] sm:%s224] %v249
                %v251 = vld [vmem:[%s231 + $0x90] sm:%s224]
                %252 = vst [vmem:[%s232 + $0x48] sm:%s224] %v251
                %v253 = vld [vmem:[%s231 + $0xa0] sm:%s224]
                %254 = vst [vmem:[%s232 + $0x50] sm:%s224] %v253
                %v255 = vld [vmem:[%s231 + $0xb0] sm:%s224]
                %256 = vst [vmem:[%s232 + $0x58] sm:%s224] %v255
                %v257 = vld [vmem:[%s231 + $0xc0] sm:%s224]
                %258 = vst [vmem:[%s232 + $0x60] sm:%s224] %v257
                %v259 = vld [vmem:[%s231 + $0xd0] sm:%s224]
                %260 = vst [vmem:[%s232 + $0x68] sm:%s224] %v259
                %v261 = vld [vmem:[%s231 + $0xe0] sm:%s224]
                %262 = vst [vmem:[%s232 + $0x70] sm:%s224] %v261
                %v263 = vld [vmem:[%s231 + $0xf0] sm:%s224]
                %264 = vst [vmem:[%s232 + $0x78] sm:%s224] %v263
              $region45: #{feed_forward_prepared.1} parent=39 // loop_footer
                %s230 = sadd.s32 1, %s226
              $region46: #{feed_forward_prepared.1} parent=39 // loop_footer_branch
                %225 = sbr.rel target = $region42
              $region47: #{feed_forward_prepared.1} parent=39 // loop_exit
                _
            $region40: #{feed_forward_prepared.1} parent=31 // pred_fallthru
              _
          $region32: #{feed_forward_prepared.1} parent=27 // pred_fallthru
            _
          %309 = vnop
        $region28: #{feed_forward_prepared.1} parent=19 // pred_fallthru
          _
        // Predicated region
        $region63: #{feed_forward_prepared.1} parent=19 // pred_check
          %p310 = pneg %p98
        $region64: #{feed_forward_prepared.1} parent=19 // pred_check_branch
          %312 = sbr.rel (%p310) target = $region66
        $region65: #{feed_forward_prepared.1} parent=19 // pred_region
          %p313 = scmp.lt.s32.totalorder %s22, 1
          %s314 = scalar_select %p313, %s22, 1
          %s315 = scalar_lea.vmem %s2, %s314
        $region66: #{feed_forward_prepared.1} parent=19 // pred_fallthru
          _
        // Predicated region
        $region67: #{feed_forward_prepared.1} parent=19 // pred_check
          %p316 = pneg %p124
        $region68: #{feed_forward_prepared.1} parent=19 // pred_check_branch
          %318 = sbr.rel (%p316) target = $region70
        $region69: #{feed_forward_prepared.1} parent=19 // pred_region
          %s319 = sand.u32 %s114, 1
          %s320 = scalar_lea.sflag [#allocation4], %s319
          %s321 = sand.u32 %s114, 1
          %s322 = smul.addr %s321, 128
          %s323 = scalar_lea.vmem [#allocation3], %s322
          %s324 = smul.u32 16, %s22
          %s326 = ssub.s32 2048, 2048
          %327 = vsyncadd %s320, %s326
          %s328 = smul.addr %s324, 128
          %s329 = scalar_lea.hbm %s3, %s328
          %s330 = sshll.u32 %s323, 4
          %s331 = int_to_ptr.vmem [resolvable:$true] %s330
          %336 = dma.hbm_to_vmem [thread:$0]  %s329, 2048, %s331, %s320, 128, 128, 8
        $region70: #{feed_forward_prepared.1} parent=19 // pred_fallthru
          _
      $region20: #{feed_forward_prepared.1} parent=5 // pred_fallthru
        _
      %p337 = scmp.le.s32.totalorder 1, %s14
      %p338 = scmp.lt.s32.totalorder %s14, 7
      %p339 = pnand %p337, %p338
      %p340 = pneg %p339
      // Predicated region
      $region71: #{feed_forward_prepared.1} parent=5 // pred_check
        _
      $region72: #{feed_forward_prepared.1} parent=5 // pred_check_branch
        %342 = sbr.rel (%p339) target = $region74
      $region73: #{feed_forward_prepared.1} parent=5 // pred_region
        %s343 = ssub.s32 %s14, 1
        %s344 = sand.u32 %s65, 1
        %s345 = sand.u32 %s65, 1
        %s346 = smul.addr %s345, 128
        %s347 = scalar_lea.vmem [#allocation2], %s346
        // Predicated region
        $region75: #{feed_forward_prepared.1} parent=73 // pred_check
          %p348 = pneg %p78
        $region76: #{feed_forward_prepared.1} parent=73 // pred_check_branch
          %350 = sbr.rel (%p348) target = $region78
        $region77: #{feed_forward_prepared.1} parent=73 // pred_region
          _
        $region78: #{feed_forward_prepared.1} parent=73 // pred_fallthru
          _
        %s351 = sand.u32 %s117, 1
        %s352 = scalar_lea.sflag [#allocation4], %s351
        %s353 = sand.u32 %s117, 1
        %s354 = smul.addr %s353, 128
        %s355 = scalar_lea.vmem [#allocation3], %s354
        // Predicated region
        $region79: #{feed_forward_prepared.1} parent=73 // pred_check
          %p356 = pneg %p130
        $region80: #{feed_forward_prepared.1} parent=73 // pred_check_branch
          %358 = sbr.rel (%p356) target = $region82
        $region81: #{feed_forward_prepared.1} parent=73 // pred_region
          %359 = dma.done %s352, 2048
        $region82: #{feed_forward_prepared.1} parent=73 // pred_fallthru
          _
        %s360 = smul.u32 2, %s23
        %p361 = scmp.lt.s32.totalorder %s360, 5
        %s362 = scalar_select %p361, %s360, 5
        %s363 = smul.addr %s362, 8
        %s364 = scalar_lea.vmem %s0, %s363
        %p365 = pneg %p52
        %p366 = pneg %p49
        %s367 = sand.u32 %s65, 1
        %s368 = sand.u32 %s65, 1
        %s369 = smul.addr %s368, 128
        %s370 = scalar_lea.vmem [#allocation2], %s369
        %p371 = pneg %p78
        %p372 = pneg %p75
        %p373 = scmp.lt.s32.totalorder %s24, 1
        %s374 = scalar_select %p373, %s24, 1
        %s375 = scalar_lea.vmem %s2, %s374
        %p376 = pneg %p104
        %p377 = pneg %p101
        %s378 = sand.u32 %s117, 1
        %s379 = scalar_lea.sflag [#allocation4], %s378
        %s380 = sand.u32 %s117, 1
        %s381 = smul.addr %s380, 128
        %s382 = scalar_lea.vmem [#allocation3], %s381
        %p383 = pneg %p130
        %p384 = pneg %p127
        %p385 = pneg %p151
        %p386 = pneg %p148
        %p387 = pneg %p177
        %p388 = pneg %p174
        %s389 = smul.u32 2, %s23
        %p390 = scmp.lt.s32.totalorder %s389, 5
        %s391 = scalar_select %p390, %s389, 5
        %s392 = smul.addr %s391, 8
        %s393 = scalar_lea.vmem %s5, %s392
        %s394 = smul.u32 2, %s23
        %p395 = scmp.lt.s32.totalorder %s394, 5
        %s396 = scalar_select %p395, %s394, 5
        %s397 = smul.addr %s396, 8
        %s398 = scalar_lea.vmem %s0, %s397
        %s399 = smul.u32 2, %s23
        %p400 = scmp.lt.s32.totalorder %s24, 1
        %s401 = scalar_select %p400, %s24, 1
        %s402 = scalar_lea.vmem %s2, %s401
        %s403 = smul.u32 16, %s24
        %s404 = smul.u32 2, %s23
        %p405 = scmp.lt.s32.totalorder %s404, 5
        %s406 = scalar_select %p405, %s404, 5
        %s407 = smul.addr %s406, 8
        %s408 = scalar_lea.vmem %s5, %s407
        %s409 = smul.u32 2, %s23
        %v410 = vld [vmem:[%s398] sm:$0xff]
        %v411 = vld [vmem:[%s398 + $0x8] sm:$0xff]
        %v412 = vld [vmem:[%s347] sm:$0xff]
        %v413 = vld [vmem:[%s347 + $0x8] sm:$0xff]
        %v414 = vld [vmem:[%s347 + $0x10] sm:$0xff]
        %v415 = vld [vmem:[%s347 + $0x18] sm:$0xff]
        %v416 = vld [vmem:[%s347 + $0x20] sm:$0xff]
        %v417 = vld [vmem:[%s347 + $0x28] sm:$0xff]
        %v418 = vld [vmem:[%s347 + $0x30] sm:$0xff]
        %v419 = vld [vmem:[%s347 + $0x38] sm:$0xff]
        %v420 = vld [vmem:[%s347 + $0x40] sm:$0xff]
        %v421 = vld [vmem:[%s347 + $0x48] sm:$0xff]
        %v422 = vld [vmem:[%s347 + $0x50] sm:$0xff]
        %v423 = vld [vmem:[%s347 + $0x58] sm:$0xff]
        %v424 = vld [vmem:[%s347 + $0x60] sm:$0xff]
        %v425 = vld [vmem:[%s347 + $0x68] sm:$0xff]
        %v426 = vld [vmem:[%s347 + $0x70] sm:$0xff]
        %v427 = vld [vmem:[%s347 + $0x78] sm:$0xff]
        %v428 = vld [vmem:[%s402] sm:$0x1]
        %v430 = vlaneseq
        %v431 = vshrl.u32 %v430, 7
        %v432 = vsub.s32 0, %v431
        %v433 = vrot.slane %v428, %v432
        %435 = vmatprep.subr.mxu0 0.0
        %436 = vmatpush1.msra.mxu0 %v427
        %437 = vmatprep.subr.mxu0 0.0
        %438 = vmatpush1.msra.mxu0 %v426
        %439 = vmatprep.subr.mxu0 0.0
        %440 = vmatpush1.msra.mxu0 %v425
        %441 = vmatprep.subr.mxu0 0.0
        %442 = vmatpush1.msra.mxu0 %v424
        %443 = vmatprep.subr.mxu0 0.0
        %444 = vmatpush1.msra.mxu0 %v423
        %445 = vmatprep.subr.mxu0 0.0
        %446 = vmatpush1.msra.mxu0 %v422
        %447 = vmatprep.subr.mxu0 0.0
        %448 = vmatpush1.msra.mxu0 %v421
        %449 = vmatprep.subr.mxu0 0.0
        %450 = vmatpush1.msra.mxu0 %v420
        %451 = vmatprep.subr.mxu0 0.0
        %452 = vmatpush1.msra.mxu0 %v419
        %453 = vmatprep.subr.mxu0 0.0
        %454 = vmatpush1.msra.mxu0 %v418
        %455 = vmatprep.subr.mxu0 0.0
        %456 = vmatpush1.msra.mxu0 %v417
        %457 = vmatprep.subr.mxu0 0.0
        %458 = vmatpush1.msra.mxu0 %v416
        %459 = vmatprep.subr.mxu0 0.0
        %460 = vmatpush1.msra.mxu0 %v415
        %461 = vmatprep.subr.mxu0 0.0
        %462 = vmatpush1.msra.mxu0 %v414
        %463 = vmatprep.subr.mxu0 0.0
        %464 = vmatpush1.msra.mxu0 %v413
        %465 = vmatprep.subr.mxu0 0.0
        %466 = vmatpush1.msra.mxu0 %v412
        %467 = vmatprep.subr.mxu0 0.0
        %468 = vmatpush2.msra.mxu0 0.0
        %469 = vmatprep.subr.mxu0 0.0
        %470 = vmatpush2.msra.mxu0 0.0
        %471 = vmatprep.subr.mxu0 0.0
        %472 = vmatpush2.msra.mxu0 0.0
        %473 = vmatprep.subr.mxu0 0.0
        %474 = vmatpush2.msra.mxu0 0.0
        %475 = vmatprep.subr.mxu0 0.0
        %476 = vmatpush2.msra.mxu0 0.0
        %477 = vmatprep.subr.mxu0 0.0
        %478 = vmatpush2.msra.mxu0 0.0
        %479 = vmatprep.subr.mxu0 0.0
        %480 = vmatpush2.msra.mxu0 0.0
        %481 = vmatprep.subr.mxu0 0.0
        %482 = vmatpush2.msra.mxu0 0.0
        %483 = vmatprep.subr.mxu0 0.0
        %484 = vmatpush2.msra.mxu0 0.0
        %485 = vmatprep.subr.mxu0 0.0
        %486 = vmatpush2.msra.mxu0 0.0
        %487 = vmatprep.subr.mxu0 0.0
        %488 = vmatpush2.msra.mxu0 0.0
        %489 = vmatprep.subr.mxu0 0.0
        %490 = vmatpush2.msra.mxu0 0.0
        %491 = vmatprep.subr.mxu0 0.0
        %492 = vmatpush2.msra.mxu0 0.0
        %493 = vmatprep.subr.mxu0 0.0
        %494 = vmatpush2.msra.mxu0 0.0
        %495 = vmatprep.subr.mxu0 0.0
        %496 = vmatpush2.msra.mxu0 0.0
        %497 = vmatprep.subr.mxu0 0.0
        %498 = vmatpush2.msra.mxu0 0.0
        %499 = vmatprep.mubr.f32.mxu0 0.0
        %500 = vmatmul.mubr.f32.gmra.mxu0 %v410
        %v501 = vpop.f32.mrf.mxu0
        %v502 = vadd.f32 %v433, %v501
        %v503 = vpop.f32.mrf.mxu0
        %504 = vmatprep.mubr.f32.mxu0 0.0
        %505 = vmatmul.mubr.f32.gmra.mxu0 %v411
        %v506 = vpop.f32.mrf.mxu0
        %v507 = vadd.f32 %v433, %v506
        %v508 = vpop.f32.mrf.mxu0
        %509 = vdwg.mxu0
        %v510 = vmax.f32 %v502, 0.0
        %v511 = vmax.f32 %v507, 0.0
        %v512 = vld [vmem:[%s355] sm:$0xff]
        %v513 = vld [vmem:[%s355 + $0x8] sm:$0xff]
        %v514 = vld [vmem:[%s355 + $0x10] sm:$0xff]
        %v515 = vld [vmem:[%s355 + $0x18] sm:$0xff]
        %v516 = vld [vmem:[%s355 + $0x20] sm:$0xff]
        %v517 = vld [vmem:[%s355 + $0x28] sm:$0xff]
        %v518 = vld [vmem:[%s355 + $0x30] sm:$0xff]
        %v519 = vld [vmem:[%s355 + $0x38] sm:$0xff]
        %v520 = vld [vmem:[%s355 + $0x40] sm:$0xff]
        %v521 = vld [vmem:[%s355 + $0x48] sm:$0xff]
        %v522 = vld [vmem:[%s355 + $0x50] sm:$0xff]
        %v523 = vld [vmem:[%s355 + $0x58] sm:$0xff]
        %v524 = vld [vmem:[%s355 + $0x60] sm:$0xff]
        %v525 = vld [vmem:[%s355 + $0x68] sm:$0xff]
        %v526 = vld [vmem:[%s355 + $0x70] sm:$0xff]
        %v527 = vld [vmem:[%s355 + $0x78] sm:$0xff]
        %528 = vmatprep.subr.mxu0 0.0
        %529 = vmatpush1.msra.mxu0 %v527
        %530 = vmatprep.subr.mxu0 0.0
        %531 = vmatpush1.msra.mxu0 %v526
        %532 = vmatprep.subr.mxu0 0.0
        %533 = vmatpush1.msra.mxu0 %v525
        %534 = vmatprep.subr.mxu0 0.0
        %535 = vmatpush1.msra.mxu0 %v524
        %536 = vmatprep.subr.mxu0 0.0
        %537 = vmatpush1.msra.mxu0 %v523
        %538 = vmatprep.subr.mxu0 0.0
        %539 = vmatpush1.msra.mxu0 %v522
        %540 = vmatprep.subr.mxu0 0.0
        %541 = vmatpush1.msra.mxu0 %v521
        %542 = vmatprep.subr.mxu0 0.0
        %543 = vmatpush1.msra.mxu0 %v520
        %544 = vmatprep.subr.mxu0 0.0
        %545 = vmatpush1.msra.mxu0 %v519
        %546 = vmatprep.subr.mxu0 0.0
        %547 = vmatpush1.msra.mxu0 %v518
        %548 = vmatprep.subr.mxu0 0.0
        %549 = vmatpush1.msra.mxu0 %v517
        %550 = vmatprep.subr.mxu0 0.0
        %551 = vmatpush1.msra.mxu0 %v516
        %552 = vmatprep.subr.mxu0 0.0
        %553 = vmatpush1.msra.mxu0 %v515
        %554 = vmatprep.subr.mxu0 0.0
        %555 = vmatpush1.msra.mxu0 %v514
        %556 = vmatprep.subr.mxu0 0.0
        %557 = vmatpush1.msra.mxu0 %v513
        %558 = vmatprep.subr.mxu0 0.0
        %559 = vmatpush1.msra.mxu0 %v512
        %560 = vmatprep.subr.mxu0 0.0
        %561 = vmatpush2.msra.mxu0 0.0
        %562 = vmatprep.subr.mxu0 0.0
        %563 = vmatpush2.msra.mxu0 0.0
        %564 = vmatprep.subr.mxu0 0.0
        %565 = vmatpush2.msra.mxu0 0.0
        %566 = vmatprep.subr.mxu0 0.0
        %567 = vmatpush2.msra.mxu0 0.0
        %568 = vmatprep.subr.mxu0 0.0
        %569 = vmatpush2.msra.mxu0 0.0
        %570 = vmatprep.subr.mxu0 0.0
        %571 = vmatpush2.msra.mxu0 0.0
        %572 = vmatprep.subr.mxu0 0.0
        %573 = vmatpush2.msra.mxu0 0.0
        %574 = vmatprep.subr.mxu0 0.0
        %575 = vmatpush2.msra.mxu0 0.0
        %576 = vmatprep.subr.mxu0 0.0
        %577 = vmatpush2.msra.mxu0 0.0
        %578 = vmatprep.subr.mxu0 0.0
        %579 = vmatpush2.msra.mxu0 0.0
        %580 = vmatprep.subr.mxu0 0.0
        %581 = vmatpush2.msra.mxu0 0.0
        %582 = vmatprep.subr.mxu0 0.0
        %583 = vmatpush2.msra.mxu0 0.0
        %584 = vmatprep.subr.mxu0 0.0
        %585 = vmatpush2.msra.mxu0 0.0
        %586 = vmatprep.subr.mxu0 0.0
        %587 = vmatpush2.msra.mxu0 0.0
        %588 = vmatprep.subr.mxu0 0.0
        %589 = vmatpush2.msra.mxu0 0.0
        %590 = vmatprep.subr.mxu0 0.0
        %591 = vmatpush2.msra.mxu0 0.0
        %592 = vmatprep.mubr.f32.mxu0 0.0
        %593 = vmatmul.mubr.f32.gmra.mxu0 %v510
        %v594 = vpop.f32.mrf.mxu0
        %v595 = vadd.f32 0.0, %v594
        %v596 = vpop.f32.mrf.mxu0
        %597 = vmatprep.mubr.f32.mxu0 0.0
        %598 = vmatmul.mubr.f32.gmra.mxu0 %v511
        %v599 = vpop.f32.mrf.mxu0
        %v600 = vadd.f32 0.0, %v599
        %v601 = vpop.f32.mrf.mxu0
        %602 = vdwg.mxu0
        %p603 = scmp.eq.s32.totalorder %s24, 0
        // Predicated region
        $region83: #{feed_forward_prepared.1} parent=73 // pred_check
          %p604 = pneg %p603
        $region84: #{feed_forward_prepared.1} parent=73 // pred_check_branch
          %606 = sbr.rel (%p604) target = $region86
        $region85: #{feed_forward_prepared.1} parent=73 // pred_region
          %607 = vst [vmem:[%s408] sm:$0xff] %v595
          %608 = vst [vmem:[%s408 + $0x8] sm:$0xff] %v600
        $region86: #{feed_forward_prepared.1} parent=73 // pred_fallthru
          _
        %p609 = scmp.gt.s32.totalorder %s24, 0
        // Predicated region
        $region87: #{feed_forward_prepared.1} parent=73 // pred_check
          %p610 = pneg %p609
        $region88: #{feed_forward_prepared.1} parent=73 // pred_check_branch
          %612 = sbr.rel (%p610) target = $region90
        $region89: #{feed_forward_prepared.1} parent=73 // pred_region
          %v613 = vld [vmem:[%s408] sm:$0xff]
          %v614 = vld [vmem:[%s408 + $0x8] sm:$0xff]
          %v615 = vadd.f32 %v613, %v595
          %v616 = vadd.f32 %v614, %v600
          %617 = vst [vmem:[%s408] sm:$0xff] %v615
          %618 = vst [vmem:[%s408 + $0x8] sm:$0xff] %v616
        $region90: #{feed_forward_prepared.1} parent=73 // pred_fallthru
          _
        %p619 = scmp.eq.s32.totalorder %s24, 1
        // Predicated region
        $region91: #{feed_forward_prepared.1} parent=73 // pred_check
          %p620 = pneg %p619
        $region92: #{feed_forward_prepared.1} parent=73 // pred_check_branch
          %622 = sbr.rel (%p620) target = $region94
        $region93: #{feed_forward_prepared.1} parent=73 // pred_region
          %v623 = vld [vmem:[%s408] sm:$0xff]
          %v624 = vld [vmem:[%s408 + $0x8] sm:$0xff]
          %v625 = vld [vmem:[%s4] sm:$0x1]
          %v627 = vlaneseq
          %v628 = vshrl.u32 %v627, 7
          %v629 = vsub.s32 0, %v628
          %v630 = vrot.slane %v625, %v629
          %v632 = vadd.f32 %v623, %v630
          %v633 = vadd.f32 %v624, %v630
          %634 = vst [vmem:[%s408] sm:$0xff] %v632
          %635 = vst [vmem:[%s408 + $0x8] sm:$0xff] %v633
        $region94: #{feed_forward_prepared.1} parent=73 // pred_fallthru
          _
        %s636 = smul.u32 2, %s23
        %p637 = scmp.lt.s32.totalorder %s636, 5
        %s638 = scalar_select %p637, %s636, 5
        %s639 = smul.addr %s638, 8
        %s640 = scalar_lea.vmem %s5, %s639
        // Predicated region
        $region95: #{feed_forward_prepared.1} parent=73 // pred_check
          %p641 = pneg %p174
        $region96: #{feed_forward_prepared.1} parent=73 // pred_check_branch
          %643 = sbr.rel (%p641) target = $region98
        $region97: #{feed_forward_prepared.1} parent=73 // pred_region
          %s644 = smul.u32 2, %s23
        $region98: #{feed_forward_prepared.1} parent=73 // pred_fallthru
          _
      $region74: #{feed_forward_prepared.1} parent=5 // pred_fallthru
        _
      %p645 = scmp.le.s32.totalorder 2, %s14
      // Predicated region
      $region99: #{feed_forward_prepared.1} parent=5 // pred_check
        %p646 = pneg %p645
      $region100: #{feed_forward_prepared.1} parent=5 // pred_check_branch
        %648 = sbr.rel (%p646) target = $region102
      $region101: #{feed_forward_prepared.1} parent=5 // pred_region
        %s649 = ssub.s32 %s14, 2
        // Predicated region
        $region103: #{feed_forward_prepared.1} parent=101 // pred_check
          %p650 = pneg %p180
        $region104: #{feed_forward_prepared.1} parent=101 // pred_check_branch
          %652 = sbr.rel (%p650) target = $region106
        $region105: #{feed_forward_prepared.1} parent=101 // pred_region
          %s653 = smul.u32 2, %s25
          %p654 = scmp.lt.s32.totalorder %s653, 5
          %s655 = scalar_select %p654, %s653, 5
          %s656 = smul.addr %s655, 8
          %s657 = scalar_lea.vmem %s5, %s656
        $region106: #{feed_forward_prepared.1} parent=101 // pred_fallthru
          _
      $region102: #{feed_forward_prepared.1} parent=5 // pred_fallthru
        _
    $region6: #{feed_forward_prepared.1} parent=1 // loop_footer
      %s18 = sadd.s32 1, %s14
    $region7: #{feed_forward_prepared.1} parent=1 // loop_footer_branch
      %13 = sbr.rel target = $region3
    $region8: #{feed_forward_prepared.1} parent=1 // loop_exit
      _
    %658 = vsyncpa [#allocation4], 1
    %s659 = scalar_lea.sflag [#allocation4], 1
    %660 = vsyncpa %s659, 1

</llo_original>
